<compile_context>
chip_gen: v7x
topology: tpu7x:2x2x1
jax: 0.10.0
libtpu: 0.0.40
codegen_flags: <defaults>
</compile_context>

<pallas_src>
import functools
import math

import jax
import jax.numpy as jnp
from jax.experimental import pallas as pl
from jax.experimental.pallas import tpu as pltpu

_BN_EPS = 1e-5
_LANE = 128
_SUBLANE = 8
_MAX_ROW_TILE = 512


# ----------------------------- small helpers ---------------------------------


def _same_pad(length, kernel_size, stride):
    """Exactly the pad computed by Conv1dPaddingSame / MaxPool1dPaddingSame."""
    if length % stride == 0:
        out_length = length // stride
    else:
        out_length = length // stride + 1
    pad = math.ceil((out_length * stride + kernel_size - length - stride) / 2)
    return max(pad, 0)  # guard: PyTorch would error on negative pad anyway


def _round_up(x, m):
    return (x + m - 1) // m * m


def _apply_act(y, act):
    if act == "relu":
        return jnp.maximum(y, 0.0)
    if act == "elu":
        # expm1 on the clamped value: same forward value, no exp overflow / NaN-grad.
        return jnp.where(y > 0, y, jnp.expm1(jnp.minimum(y, 0.0)))
    if act == "sigmoid":
        return jax.nn.sigmoid(y)
    # TODO(synk): nn.Softmax() with unspecified dim has no clean equivalent here.
    raise ValueError(f"unsupported activation: {act}")


# ----------------------------- Pallas kernels --------------------------------


def _fused_branches_kernel(patch_ref, pool_ref, mask_ref, wc_ref, wp_ref, b_ref,
                           z_ref, sum_ref, sq_ref, *, pool_k):
    """Pass A: fused conv matmul + VPU max-pool + 1x1 matmul + partial BN stats.

    patch_ref: (TR, Kmax*Cin)   shared im2col rows for the 3 conv branches
    pool_ref : (K4, TR, Cin)    pre-sliced max-pool taps
    mask_ref : (TR, 1)          1.0 for real rows, 0.0 for row padding
    wc_ref   : (Kmax*Cin, Cp)   block-structured fused conv weights
    wp_ref   : (Cin, Cp)        1x1 pool-branch weight (disjoint columns)
    b_ref    : (1, Cp)          concatenated biases
    z_ref    : (TR, Cp)         pre-BN activations (lane-dense, Cp multiple of 128)
    sum_ref, sq_ref: (1, 1, Cp) per-tile partial sum / sum-of-squares
    """
    # Max-pool over the K4 taps: pure VPU compares, no MXU involvement.
    pooled = pool_ref[0]
    for k in range(1, pool_k):
        pooled = jnp.maximum(pooled, pool_ref[k])

    # One fused MXU matmul for the three conv branches (contraction Kmax*Cin),
    # plus a tiny 1x1 matmul for the pooled branch; output columns are disjoint.
    z = jnp.dot(patch_ref[...], wc_ref[...], preferred_element_type=jnp.float32)
    z = z + jnp.dot(pooled, wp_ref[...], preferred_element_type=jnp.float32)
    z = z + b_ref[...]
    z_ref[...] = z

    # Masked partial BatchNorm statistics for this row tile.
    m = mask_ref[...]
    zm = z * m
    sum_ref[...] = jnp.sum(zm, axis=0, keepdims=True)[None]
    sq_ref[...] = jnp.sum(zm * z, axis=0, keepdims=True)[None]


def _bn_act_kernel(z_ref, scale_ref, shift_ref, o_ref, *, act):
    """Pass B: per-channel affine (folded BN) + activation."""
    y = z_ref[...] * scale_ref[...] + shift_ref[...]
    o_ref[...] = _apply_act(y, act)


# ----------------------------- forward wrapper --------------------------------


def inception_blk_forward(params, x, kernel_size, stride, activation,
                          compute_dtype=jnp.float32):
    """x: (B, C_in, L) NCL like the PyTorch module. Returns (B, sum(Cout), Lout).

    compute_dtype: dtype of the MXU operands (jnp.bfloat16 recommended on v6e/v7x;
    f32 default keeps exact parity with the PyTorch reference). Accumulation, BN
    and the activation always run in f32.
    """
    x = x.astype(jnp.float32)
    batch, cin, length = x.shape
    x_nlc = jnp.transpose(x, (0, 2, 1))  # NCL -> NLC once; stay NLC until the end.

    conv_ks = [int(kernel_size[0]), int(kernel_size[1]), int(kernel_size[2])]
    pool_k = int(kernel_size[3])
    k_big = max(conv_ks)

    # Per-branch "same" pads / output lengths (torch.cat requires them to agree).
    pads = [_same_pad(length, k, stride) for k in conv_ks]
    louts = [(length + 2 * p - k) // stride + 1 for p, k in zip(pads, conv_ks)]
    pad_pool = _same_pad(length, pool_k, stride)
    louts.append((length + 2 * pad_pool - pool_k) // stride + 1)  # 1x1 conv keeps it
    if len(set(louts)) != 1:
        raise ValueError(f"branch output lengths differ: {louts}")
    lout = louts[0]
    pad_big = pads[conv_ks.index(k_big)]

    # ---- shared im2col for the conv branches (host-side strided slices) ----
    xpad = jnp.pad(x_nlc, ((0, 0), (pad_big, pad_big), (0, 0)))
    span = (lout - 1) * stride + 1
    taps = [xpad[:, k:k + span:stride, :] for k in range(k_big)]  # (B, Lout, Cin) each
    patch = jnp.concatenate(taps, axis=-1).reshape(batch * lout, k_big * cin)

    # ---- max-pool window taps (sentinel pad == F.max_pool1d's -inf pad) ----
    sentinel = float(jnp.finfo(compute_dtype).min)
    xpad_p = jnp.pad(x_nlc, ((0, 0), (pad_pool, pad_pool), (0, 0)),
                     constant_values=sentinel)
    pool_taps = [xpad_p[:, k:k + span:stride, :] for k in range(pool_k)]
    pool_patch = jnp.stack(pool_taps, axis=0).reshape(pool_k, batch * lout, cin)

    # ---- fused, lane-dense weights / bias / BN params ----
    couts = [params[f"w{i}"].shape[0] for i in (1, 2, 3, 4)]
    c_tot = sum(couts)
    cp = _round_up(c_tot, _LANE)          # lane-dense output columns
    col_off = [0]
    for c in couts:
        col_off.append(col_off[-1] + c)

    kc = k_big * cin
    wc = jnp.zeros((kc, cp), jnp.float32)
    for i, (k_i, pad_i) in enumerate(zip(conv_ks, pads)):
        w_i = params[f"w{i + 1}"].astype(jnp.float32)          # (Cout_i, Cin, K_i)
        off = pad_big - pad_i                                  # tap offset in big window
        assert 0 <= off and off + k_i <= k_big
        w_t = jnp.transpose(w_i, (2, 1, 0)).reshape(k_i * cin, couts[i])
        wc = wc.at[off * cin:(off + k_i) * cin, col_off[i]:col_off[i + 1]].set(w_t)

    wp = jnp.zeros((cin, cp), jnp.float32)
    wp = wp.at[:, col_off[3]:col_off[4]].set(
        jnp.transpose(params["w4"][:, :, 0], (1, 0)).astype(jnp.float32))

    bias = jnp.zeros((1, cp), jnp.float32)
    bias = bias.at[0, :c_tot].set(jnp.concatenate(
        [params["b1"], params["b2"], params["b3"], params["b4"]]).astype(jnp.float32))
    gamma = jnp.concatenate([params[f"gamma{i}"] for i in (1, 2, 3, 4)]).astype(jnp.float32)
    beta = jnp.concatenate([params[f"beta{i}"] for i in (1, 2, 3, 4)]).astype(jnp.float32)

    # ---- row tiling (multiple of 8, capped; padded rows masked out of BN) ----
    rows = batch * lout
    tr = min(_MAX_ROW_TILE, _round_up(rows, _SUBLANE))
    rows_p = _round_up(rows, tr)
    n_tiles = rows_p // tr

    patch = jnp.pad(patch, ((0, rows_p - rows), (0, 0))).astype(compute_dtype)
    pool_patch = jnp.pad(pool_patch,
                         ((0, 0), (0, rows_p - rows), (0, 0))).astype(compute_dtype)
    mask = jnp.zeros((rows_p, 1), jnp.float32).at[:rows, 0].set(1.0)
    wc = wc.astype(compute_dtype)
    wp = wp.astype(compute_dtype)

    cparams = pltpu.CompilerParams(
        dimension_semantics=("parallel",),            # shard row tiles across TCs (v7x)
        vmem_limit_bytes=32 * 1024 * 1024)            # explicit budget, fits v7x too

    # ---- pass A: fused matmuls + partial BN stats ----
    kern_a = functools.partial(_fused_branches_kernel, pool_k=pool_k)
    z, ssum, ssq = pl.pallas_call(
        kern_a,
        out_shape=(jax.ShapeDtypeStruct((rows_p, cp), jnp.float32),
                   jax.ShapeDtypeStruct((n_tiles, 1, cp), jnp.float32),
                   jax.ShapeDtypeStruct((n_tiles, 1, cp), jnp.float32)),
        grid=(n_tiles,),
        in_specs=[
            pl.BlockSpec((tr, kc), lambda i: (i, 0)),
            pl.BlockSpec((pool_k, tr, cin), lambda i: (0, i, 0)),
            pl.BlockSpec((tr, 1), lambda i: (i, 0)),
            pl.BlockSpec((kc, cp), lambda i: (0, 0)),
            pl.BlockSpec((cin, cp), lambda i: (0, 0)),
            pl.BlockSpec((1, cp), lambda i: (0, 0)),
        ],
        out_specs=(
            pl.BlockSpec((tr, cp), lambda i: (i, 0)),
            pl.BlockSpec((1, 1, cp), lambda i: (i, 0, 0)),
            pl.BlockSpec((1, 1, cp), lambda i: (i, 0, 0)),
        ),
        compiler_params=cparams,
    )(patch, pool_patch, mask, wc, wp, bias)

    # ---- tiny host-side BN finalize (training-mode batch stats, biased var) ----
    total_sum = jnp.sum(ssum, axis=(0, 1))            # (Cp,)
    total_sq = jnp.sum(ssq, axis=(0, 1))              # (Cp,)
    mean = total_sum / rows
    var = jnp.maximum(total_sq / rows - mean * mean, 0.0)
    inv = jax.lax.rsqrt(var + _BN_EPS)
    gamma_p = jnp.zeros((cp,), jnp.float32).at[:c_tot].set(gamma)
    beta_p = jnp.zeros((cp,), jnp.float32).at[:c_tot].set(beta)
    scale = (gamma_p * inv).reshape(1, cp)
    shift = (beta_p - mean * gamma_p * inv).reshape(1, cp)

    # ---- pass B: normalize + activation ----
    kern_b = functools.partial(_bn_act_kernel, act=activation)
    out = pl.pallas_call(
        kern_b,
        out_shape=jax.ShapeDtypeStruct((rows_p, cp), jnp.float32),
        grid=(n_tiles,),
        in_specs=[
            pl.BlockSpec((tr, cp), lambda i: (i, 0)),
            pl.BlockSpec((1, cp), lambda i: (0, 0)),
            pl.BlockSpec((1, cp), lambda i: (0, 0)),
        ],
        out_specs=pl.BlockSpec((tr, cp), lambda i: (i, 0)),
        compiler_params=cparams,
    )(z, scale, shift)

    out = out[:rows, :c_tot].reshape(batch, lout, c_tot)
    return jnp.transpose(out, (0, 2, 1))              # single transpose back to NCL


# ----------------------------- parameters -------------------------------------


def init_inception_params(key, in_channels, out_channels, kernel_size):
    """torch.rand-style (uniform [0,1)) conv weights/biases; BN weight=1, bias=0."""
    keys = jax.random.split(key, 8)
    params = {}
    for i in range(3):
        params[f"w{i + 1}"] = jax.random.uniform(
            keys[2 * i], (out_channels[i], in_channels, kernel_size[i]), jnp.float32)
        params[f"b{i + 1}"] = jax.random.uniform(
            keys[2 * i + 1], (out_channels[i],), jnp.float32)
    params["w4"] = jax.random.uniform(
        keys[6], (out_channels[3], in_channels, 1), jnp.float32)
    params["b4"] = jax.random.uniform(keys[7], (out_channels[3],), jnp.float32)
    for i in range(4):
        params[f"gamma{i + 1}"] = jnp.ones((out_channels[i],), jnp.float32)
        params[f"beta{i + 1}"] = jnp.zeros((out_channels[i],), jnp.float32)
    return params


# ----------------------------- pure-JAX reference -----------------------------


def _ref_conv1d_same(x_ncl, w, b, stride):
    length = x_ncl.shape[2]
    k = w.shape[2]
    pad = _same_pad(length, k, stride)
    out = jax.lax.conv_general_dilated(
        x_ncl, w, window_strides=(stride,), padding=((pad, pad),),
        dimension_numbers=("NCH", "OIH", "NCH"))
    return out + b.reshape(1, -1, 1)


def _ref_maxpool1d_same(x_ncl, k, stride):
    length = x_ncl.shape[2]
    pad = _same_pad(length, k, stride)
    return jax.lax.reduce_window(
        x_ncl, -jnp.inf, jax.lax.max,
        window_dimensions=(1, 1, k), window_strides=(1, 1, stride),
        padding=((0, 0), (0, 0), (pad, pad)))


def _ref_bn_act(y, gamma, beta, act):
    mean = jnp.mean(y, axis=(0, 2), keepdims=True)
    var = jnp.mean((y - mean) ** 2, axis=(0, 2), keepdims=True)
    yn = (y - mean) * jax.lax.rsqrt(var + _BN_EPS)
    return _apply_act(yn * gamma.reshape(1, -1, 1) + beta.reshape(1, -1, 1), act)


def _reference_forward(params, x, kernel_size, stride, activation):
    x = x.astype(jnp.float32)
    outs = []
    for i in range(3):
        y = _ref_conv1d_same(x, params[f"w{i + 1}"], params[f"b{i + 1}"], stride)
        outs.append(_ref_bn_act(y, params[f"gamma{i + 1}"], params[f"beta{i + 1}"],
                                activation))
    p = _ref_maxpool1d_same(x, int(kernel_size[3]), stride)
    y4 = _ref_conv1d_same(p, params["w4"], params["b4"], 1)
    outs.append(_ref_bn_act(y4, params["gamma4"], params["beta4"], activation))
    return jnp.concatenate(outs, axis=1)


# ----------------------------- demo / self-test --------------------------------


if __name__ == "__main__":
    B, C_IN, L = 2, 4, 16
    OUT_CHANNELS = [8, 8, 8, 8]
    KERNEL_SIZE = [3, 5, 7, 3]
    STRIDE = 2
    ACTIVATION = "relu"

    key = jax.random.PRNGKey(0)
    kx, kp = jax.random.split(key)
    x = jax.random.normal(kx, (B, C_IN, L), jnp.float32)
    params = init_inception_params(kp, C_IN, OUT_CHANNELS, KERNEL_SIZE)

    fwd = jax.jit(functools.partial(
        inception_blk_forward, kernel_size=KERNEL_SIZE, stride=STRIDE,
        activation=ACTIVATION, compute_dtype=jnp.float32))
    out = jax.block_until_ready(fwd(params, x))

    expected_len = -(-L // STRIDE)  # ceil(L / stride)
    assert out.shape == (B, sum(OUT_CHANNELS), expected_len), out.shape
    assert bool(jnp.all(jnp.isfinite(out)))

    ref = _reference_forward(params, x, KERNEL_SIZE, STRIDE, ACTIVATION)
    max_err = float(jnp.max(jnp.abs(out - ref)))
    assert jnp.allclose(out, ref, rtol=2e-3, atol=2e-3), max_err

    print("KERNEL_OK")
</pallas_src>

<mosaic_0001>
module attributes {stable_mosaic.version = 11 : i64} {
  func.func @_fused_branches_kernel(%arg0: i32, %arg1: memref<16x28xf32, #tpu.memory_space<vmem>>, %arg2: memref<3x16x4xf32, #tpu.memory_space<vmem>>, %arg3: memref<16x1xf32, #tpu.memory_space<vmem>>, %arg4: memref<28x128xf32, #tpu.memory_space<vmem>>, %arg5: memref<4x128xf32, #tpu.memory_space<vmem>>, %arg6: memref<1x128xf32, #tpu.memory_space<vmem>>, %arg7: memref<16x128xf32, #tpu.memory_space<vmem>>, %arg8: memref<1x1x128xf32, #tpu.memory_space<vmem>>, %arg9: memref<1x1x128xf32, #tpu.memory_space<vmem>>) attributes {dimension_semantics = [#tpu.dimension_semantics<parallel>], iteration_bounds = array<i64: 1>, scalar_prefetch = 0 : i64, scratch_operands = 0 : i64, tpu.core_type = #tpu.core_type<tc>, window_params = [{transform_indices = @transform_0, window_bounds = array<i64: 16, 28>}, {transform_indices = @transform_1, window_bounds = array<i64: 3, 16, 4>}, {transform_indices = @transform_2, window_bounds = array<i64: 16, 1>}, {pipeline_mode = #tpu.pipeline_mode<synchronous>, transform_indices = @transform_3, window_bounds = array<i64: 28, 128>}, {pipeline_mode = #tpu.pipeline_mode<synchronous>, transform_indices = @transform_4, window_bounds = array<i64: 4, 128>}, {pipeline_mode = #tpu.pipeline_mode<synchronous>, transform_indices = @transform_5, window_bounds = array<i64: 1, 128>}, {transform_indices = @transform_6, window_bounds = array<i64: 16, 128>}, {transform_indices = @transform_7, window_bounds = array<i64: 1, 1, 128>}, {transform_indices = @transform_8, window_bounds = array<i64: 1, 1, 128>}]} {
    %c0 = arith.constant 0 : index
    %c0_0 = arith.constant 0 : index
    %c0_1 = arith.constant 0 : index
    %0 = vector.load %arg2[%c0, %c0_0, %c0_1] : memref<3x16x4xf32, #tpu.memory_space<vmem>>, vector<1x16x4xf32>
    %1 = vector.shape_cast %0 : vector<1x16x4xf32> to vector<16x4xf32>
    %c1 = arith.constant 1 : index
    %c0_2 = arith.constant 0 : index
    %c0_3 = arith.constant 0 : index
    %2 = vector.load %arg2[%c1, %c0_2, %c0_3] : memref<3x16x4xf32, #tpu.memory_space<vmem>>, vector<1x16x4xf32>
    %3 = vector.shape_cast %2 : vector<1x16x4xf32> to vector<16x4xf32>
    %4 = arith.maximumf %1, %3 : vector<16x4xf32>
    %c2 = arith.constant 2 : index
    %c0_4 = arith.constant 0 : index
    %c0_5 = arith.constant 0 : index
    %5 = vector.load %arg2[%c2, %c0_4, %c0_5] : memref<3x16x4xf32, #tpu.memory_space<vmem>>, vector<1x16x4xf32>
    %6 = vector.shape_cast %5 : vector<1x16x4xf32> to vector<16x4xf32>
    %7 = arith.maximumf %4, %6 : vector<16x4xf32>
    %c0_6 = arith.constant 0 : index
    %c0_7 = arith.constant 0 : index
    %8 = vector.load %arg1[%c0_6, %c0_7] : memref<16x28xf32, #tpu.memory_space<vmem>>, vector<16x28xf32>
    %c0_8 = arith.constant 0 : index
    %c0_9 = arith.constant 0 : index
    %9 = vector.load %arg4[%c0_8, %c0_9] : memref<28x128xf32, #tpu.memory_space<vmem>>, vector<28x128xf32>
    %cst = arith.constant dense<0.000000e+00> : vector<16x128xf32>
    %10 = tpu.matmul %8, %9, %cst {dimension_numbers = #tpu.dot_dimension_numbers<[1], [0], [0], [1], [0, 0, 1, 1], [], []>} : vector<16x28xf32>, vector<28x128xf32>, vector<16x128xf32> -> vector<16x128xf32>
    %c0_10 = arith.constant 0 : index
    %c0_11 = arith.constant 0 : index
    %11 = vector.load %arg5[%c0_10, %c0_11] : memref<4x128xf32, #tpu.memory_space<vmem>>, vector<4x128xf32>
    %cst_12 = arith.constant dense<0.000000e+00> : vector<16x128xf32>
    %12 = tpu.matmul %7, %11, %cst_12 {dimension_numbers = #tpu.dot_dimension_numbers<[1], [0], [0], [1], [0, 0, 1, 1], [], []>} : vector<16x4xf32>, vector<4x128xf32>, vector<16x128xf32> -> vector<16x128xf32>
    %13 = arith.addf %10, %12 : vector<16x128xf32>
    %c0_13 = arith.constant 0 : index
    %c0_14 = arith.constant 0 : index
    %14 = vector.load %arg6[%c0_13, %c0_14] : memref<1x128xf32, #tpu.memory_space<vmem>>, vector<1x128xf32>
    %15 = vector.broadcast %14 : vector<1x128xf32> to vector<16x128xf32>
    %16 = arith.addf %13, %15 : vector<16x128xf32>
    %c0_15 = arith.constant 0 : index
    %c0_16 = arith.constant 0 : index
    %17 = vector.load %arg7[%c0_15, %c0_16] : memref<16x128xf32, #tpu.memory_space<vmem>>, vector<16x128xf32>
    tpu.vector_store %arg7[%c0_15, %c0_16], %16 {strides = array<i32>} : memref<16x128xf32, #tpu.memory_space<vmem>>, vector<16x128xf32>,
    %c0_17 = arith.constant 0 : index
    %c0_18 = arith.constant 0 : index
    %18 = vector.load %arg3[%c0_17, %c0_18] : memref<16x1xf32, #tpu.memory_space<vmem>>, vector<16x1xf32>
    %19 = vector.broadcast %18 : vector<16x1xf32> to vector<16x128xf32>
    %20 = arith.mulf %16, %19 : vector<16x128xf32>
    %cst_19 = arith.constant dense<0.000000e+00> : vector<128xf32>
    %21 = vector.multi_reduction <add>, %20, %cst_19 [0] : vector<16x128xf32> to vector<128xf32>
    %22 = vector.shape_cast %21 : vector<128xf32> to vector<1x128xf32>
    %23 = vector.shape_cast %22 : vector<1x128xf32> to vector<1x1x128xf32>
    %c0_20 = arith.constant 0 : index
    %c0_21 = arith.constant 0 : index
    %c0_22 = arith.constant 0 : index
    %24 = vector.load %arg8[%c0_20, %c0_21, %c0_22] : memref<1x1x128xf32, #tpu.memory_space<vmem>>, vector<1x1x128xf32>
    tpu.vector_store %arg8[%c0_20, %c0_21, %c0_22], %23 {strides = array<i32>} : memref<1x1x128xf32, #tpu.memory_space<vmem>>, vector<1x1x128xf32>,
    %25 = arith.mulf %20, %16 : vector<16x128xf32>
    %cst_23 = arith.constant dense<0.000000e+00> : vector<128xf32>
    %26 = vector.multi_reduction <add>, %25, %cst_23 [0] : vector<16x128xf32> to vector<128xf32>
    %27 = vector.shape_cast %26 : vector<128xf32> to vector<1x128xf32>
    %28 = vector.shape_cast %27 : vector<1x128xf32> to vector<1x1x128xf32>
    %c0_24 = arith.constant 0 : index
    %c0_25 = arith.constant 0 : index
    %c0_26 = arith.constant 0 : index
    %29 = vector.load %arg9[%c0_24, %c0_25, %c0_26] : memref<1x1x128xf32, #tpu.memory_space<vmem>>, vector<1x1x128xf32>
    tpu.vector_store %arg9[%c0_24, %c0_25, %c0_26], %28 {strides = array<i32>} : memref<1x1x128xf32, #tpu.memory_space<vmem>>, vector<1x1x128xf32>,
    return
  }
  func.func @transform_0(%arg0: i32) -> (i32, i32) {
    %c0_i32 = arith.constant 0 : i32
    %c0_i32_0 = arith.constant 0 : i32
    return %arg0, %c0_i32 : i32, i32
  }
  func.func @transform_1(%arg0: i32) -> (i32, i32, i32) {
    %c0_i32 = arith.constant 0 : i32
    %c0_i32_0 = arith.constant 0 : i32
    %c0_i32_1 = arith.constant 0 : i32
    return %c0_i32, %arg0, %c0_i32_0 : i32, i32, i32
  }
  func.func @transform_2(%arg0: i32) -> (i32, i32) {
    %c0_i32 = arith.constant 0 : i32
    %c0_i32_0 = arith.constant 0 : i32
    return %arg0, %c0_i32 : i32, i32
  }
  func.func @transform_3(%arg0: i32) -> (i32, i32) {
    %c0_i32 = arith.constant 0 : i32
    %c0_i32_0 = arith.constant 0 : i32
    %c0_i32_1 = arith.constant 0 : i32
    return %c0_i32, %c0_i32_0 : i32, i32
  }
  func.func @transform_4(%arg0: i32) -> (i32, i32) {
    %c0_i32 = arith.constant 0 : i32
    %c0_i32_0 = arith.constant 0 : i32
    %c0_i32_1 = arith.constant 0 : i32
    return %c0_i32, %c0_i32_0 : i32, i32
  }
  func.func @transform_5(%arg0: i32) -> (i32, i32) {
    %c0_i32 = arith.constant 0 : i32
    %c0_i32_0 = arith.constant 0 : i32
    %c0_i32_1 = arith.constant 0 : i32
    return %c0_i32, %c0_i32_0 : i32, i32
  }
  func.func @transform_6(%arg0: i32) -> (i32, i32) {
    %c0_i32 = arith.constant 0 : i32
    %c0_i32_0 = arith.constant 0 : i32
    return %arg0, %c0_i32 : i32, i32
  }
  func.func @transform_7(%arg0: i32) -> (i32, i32, i32) {
    %c0_i32 = arith.constant 0 : i32
    %c0_i32_0 = arith.constant 0 : i32
    %c0_i32_1 = arith.constant 0 : i32
    return %arg0, %c0_i32, %c0_i32_0 : i32, i32, i32
  }
  func.func @transform_8(%arg0: i32) -> (i32, i32, i32) {
    %c0_i32 = arith.constant 0 : i32
    %c0_i32_0 = arith.constant 0 : i32
    %c0_i32_1 = arith.constant 0 : i32
    return %arg0, %c0_i32, %c0_i32_0 : i32, i32, i32
  }
}

module attributes {stable_mosaic.version = 11 : i64} {
  func.func @_bn_act_kernel(%arg0: i32, %arg1: memref<16x128xf32, #tpu.memory_space<vmem>>, %arg2: memref<1x128xf32, #tpu.memory_space<vmem>>, %arg3: memref<1x128xf32, #tpu.memory_space<vmem>>, %arg4: memref<16x128xf32, #tpu.memory_space<vmem>>) attributes {dimension_semantics = [#tpu.dimension_semantics<parallel>], iteration_bounds = array<i64: 1>, scalar_prefetch = 0 : i64, scratch_operands = 0 : i64, tpu.core_type = #tpu.core_type<tc>, window_params = [{transform_indices = @transform_0, window_bounds = array<i64: 16, 128>}, {pipeline_mode = #tpu.pipeline_mode<synchronous>, transform_indices = @transform_1, window_bounds = array<i64: 1, 128>}, {pipeline_mode = #tpu.pipeline_mode<synchronous>, transform_indices = @transform_2, window_bounds = array<i64: 1, 128>}, {transform_indices = @transform_3, window_bounds = array<i64: 16, 128>}]} {
    %c0 = arith.constant 0 : index
    %c0_0 = arith.constant 0 : index
    %0 = vector.load %arg1[%c0, %c0_0] : memref<16x128xf32, #tpu.memory_space<vmem>>, vector<16x128xf32>
    %c0_1 = arith.constant 0 : index
    %c0_2 = arith.constant 0 : index
    %1 = vector.load %arg2[%c0_1, %c0_2] : memref<1x128xf32, #tpu.memory_space<vmem>>, vector<1x128xf32>
    %2 = vector.broadcast %1 : vector<1x128xf32> to vector<16x128xf32>
    %3 = arith.mulf %0, %2 : vector<16x128xf32>
    %c0_3 = arith.constant 0 : index
    %c0_4 = arith.constant 0 : index
    %4 = vector.load %arg3[%c0_3, %c0_4] : memref<1x128xf32, #tpu.memory_space<vmem>>, vector<1x128xf32>
    %5 = vector.broadcast %4 : vector<1x128xf32> to vector<16x128xf32>
    %6 = arith.addf %3, %5 : vector<16x128xf32>
    %cst = arith.constant 0.000000e+00 : f32
    %7 = vector.broadcast %cst : f32 to vector<16x128xf32>
    %8 = arith.maximumf %6, %7 : vector<16x128xf32>
    %c0_5 = arith.constant 0 : index
    %c0_6 = arith.constant 0 : index
    %9 = vector.load %arg4[%c0_5, %c0_6] : memref<16x128xf32, #tpu.memory_space<vmem>>, vector<16x128xf32>
    tpu.vector_store %arg4[%c0_5, %c0_6], %8 {strides = array<i32>} : memref<16x128xf32, #tpu.memory_space<vmem>>, vector<16x128xf32>,
    return
  }
  func.func @transform_0(%arg0: i32) -> (i32, i32) {
    %c0_i32 = arith.constant 0 : i32
    %c0_i32_0 = arith.constant 0 : i32
    return %arg0, %c0_i32 : i32, i32
  }
  func.func @transform_1(%arg0: i32) -> (i32, i32) {
    %c0_i32 = arith.constant 0 : i32
    %c0_i32_0 = arith.constant 0 : i32
    %c0_i32_1 = arith.constant 0 : i32
    return %c0_i32, %c0_i32_0 : i32, i32
  }
  func.func @transform_2(%arg0: i32) -> (i32, i32) {
    %c0_i32 = arith.constant 0 : i32
    %c0_i32_0 = arith.constant 0 : i32
    %c0_i32_1 = arith.constant 0 : i32
    return %c0_i32, %c0_i32_0 : i32, i32
  }
  func.func @transform_3(%arg0: i32) -> (i32, i32) {
    %c0_i32 = arith.constant 0 : i32
    %c0_i32_0 = arith.constant 0 : i32
    return %arg0, %c0_i32 : i32, i32
  }
}

</mosaic_0001>

<llo_original>
// kernel: inception_blk_forward.3
$region0: #{inception_blk_forward.3}
  #allocation0 [shape = 'u32[]', space=smem, size = 0x4, offset = 0x4, fixed_abs, tag = 'smem constant byte address 0x4 - core index']
  #allocation1 [shape = 'u32[144,128]{1,0:T(1,128)}', space=vmem, size = 0x12000, scoped, tag = 'internal scratch']
  %s0 = inlined_call_operand.vmem [shape: f32[16,128], index: 0, kind: input, shape index: {}]
  %s1 = inlined_call_operand.vmem [shape: f32[1,128], index: 1, kind: input, shape index: {}]
  %s2 = inlined_call_operand.vmem [shape: f32[1,128], index: 2, kind: input, shape index: {}]
  %s3 = inlined_call_operand.vmem [shape: f32[16,128], index: 3, kind: output, shape index: {}]
  %s4 = sld [smem:[#allocation0]]
  $region22: #{inception_blk_forward.3} parent=0
    _
  %s6 = ssub.s32 1, %s4
  %s7 = scalar_select 0, %s6, %s4
  // Predicated region
  $region2: #{inception_blk_forward.3} parent=0 // pred_check
    _
  $region3: #{inception_blk_forward.3} parent=0 // pred_check_branch
    %9 = sbr.rel (0) target = $region5
  $region4: #{inception_blk_forward.3} parent=0 // pred_region
    _
  $region5: #{inception_blk_forward.3} parent=0 // pred_fallthru
    _
  // Predicated region
  $region6: #{inception_blk_forward.3} parent=0 // pred_check
    _
  $region7: #{inception_blk_forward.3} parent=0 // pred_check_branch
    %11 = sbr.rel (0) target = $region9
  $region8: #{inception_blk_forward.3} parent=0 // pred_region
    _
  $region9: #{inception_blk_forward.3} parent=0 // pred_fallthru
    _
  // Predicated region
  $region10: #{inception_blk_forward.3} parent=0 // pred_check
    _
  $region11: #{inception_blk_forward.3} parent=0 // pred_check_branch
    %13 = sbr.rel (0) target = $region13
  $region12: #{inception_blk_forward.3} parent=0 // pred_region
    _
  $region13: #{inception_blk_forward.3} parent=0 // pred_fallthru
    _
  %v14 = vld [vmem:[%s0] sm:$0xff]
  %v15 = vld [vmem:[%s0 + $0x8] sm:$0xff]
  %v16 = vld [vmem:[%s1] sm:$0x1]
  %v18 = vlaneseq
  %v19 = vshrl.u32 %v18, 7
  %v20 = vsub.s32 0, %v19
  %v21 = vrot.slane %v16, %v20
  %v23 = vmul.f32 %v14, %v21
  %v24 = vmul.f32 %v15, %v21
  %v25 = vld [vmem:[%s2] sm:$0x1]
  %v27 = vlaneseq
  %v28 = vshrl.u32 %v27, 7
  %v29 = vsub.s32 0, %v28
  %v30 = vrot.slane %v25, %v29
  %v32 = vadd.f32 %v23, %v30
  %v33 = vadd.f32 %v24, %v30
  %v34 = vmax.f32 %v32, 0.0
  %v35 = vmax.f32 %v33, 0.0
  %36 = vst [vmem:[%s3] sm:$0xff] %v34
  %37 = vst [vmem:[%s3 + $0x8] sm:$0xff] %v35
  // Predicated region
  $region14: #{inception_blk_forward.3} parent=0 // pred_check
    _
  $region15: #{inception_blk_forward.3} parent=0 // pred_check_branch
    %39 = sbr.rel (0) target = $region17
  $region16: #{inception_blk_forward.3} parent=0 // pred_region
    _
  $region17: #{inception_blk_forward.3} parent=0 // pred_fallthru
    _
  // Predicated region
  $region18: #{inception_blk_forward.3} parent=0 // pred_check
    _
  $region19: #{inception_blk_forward.3} parent=0 // pred_check_branch
    %41 = sbr.rel (0) target = $region21
  $region20: #{inception_blk_forward.3} parent=0 // pred_region
    _
  $region21: #{inception_blk_forward.3} parent=0 // pred_fallthru
    _

// kernel: inception_blk_forward.2
$region0: #{inception_blk_forward.2}
  #allocation0 [shape = 'u32[]', space=smem, size = 0x4, offset = 0x4, fixed_abs, tag = 'smem constant byte address 0x4 - core index']
  #allocation1 [shape = 'u32[144,128]{1,0:T(1,128)}', space=vmem, size = 0x12000, scoped, tag = 'internal scratch']
  %s0 = inlined_call_operand.vmem [shape: f32[16,28], index: 0, kind: input, shape index: {}]
  %s1 = inlined_call_operand.vmem [shape: f32[3,16,4], index: 1, kind: input, shape index: {}]
  %s2 = inlined_call_operand.vmem [shape: f32[16,1], index: 2, kind: input, shape index: {}]
  %s3 = inlined_call_operand.vmem [shape: f32[28,128], index: 3, kind: input, shape index: {}]
  %s4 = inlined_call_operand.vmem [shape: f32[4,128], index: 4, kind: input, shape index: {}]
  %s5 = inlined_call_operand.vmem [shape: f32[1,128], index: 5, kind: input, shape index: {}]
  %s6 = inlined_call_operand.vmem [shape: f32[16,128], index: 6, kind: output, shape index: {0}]
  %s7 = inlined_call_operand.vmem [shape: f32[1,1,128], index: 7, kind: output, shape index: {1}]
  %s8 = inlined_call_operand.vmem [shape: f32[1,1,128], index: 8, kind: output, shape index: {2}]
  %9 = xla_tuple %s6, %s7, %s8
  %s10 = sld [smem:[#allocation0]]
  $region50: #{inception_blk_forward.2} parent=0
    _
  %s12 = ssub.s32 1, %s10
  %s13 = scalar_select 0, %s12, %s10
  // Predicated region
  $region2: #{inception_blk_forward.2} parent=0 // pred_check
    _
  $region3: #{inception_blk_forward.2} parent=0 // pred_check_branch
    %15 = sbr.rel (0) target = $region5
  $region4: #{inception_blk_forward.2} parent=0 // pred_region
    _
  $region5: #{inception_blk_forward.2} parent=0 // pred_fallthru
    _
  // Predicated region
  $region6: #{inception_blk_forward.2} parent=0 // pred_check
    _
  $region7: #{inception_blk_forward.2} parent=0 // pred_check_branch
    %17 = sbr.rel (0) target = $region9
  $region8: #{inception_blk_forward.2} parent=0 // pred_region
    _
  $region9: #{inception_blk_forward.2} parent=0 // pred_fallthru
    _
  // Predicated region
  $region10: #{inception_blk_forward.2} parent=0 // pred_check
    _
  $region11: #{inception_blk_forward.2} parent=0 // pred_check_branch
    %19 = sbr.rel (0) target = $region13
  $region12: #{inception_blk_forward.2} parent=0 // pred_region
    _
  $region13: #{inception_blk_forward.2} parent=0 // pred_fallthru
    _
  // Predicated region
  $region14: #{inception_blk_forward.2} parent=0 // pred_check
    _
  $region15: #{inception_blk_forward.2} parent=0 // pred_check_branch
    %21 = sbr.rel (0) target = $region17
  $region16: #{inception_blk_forward.2} parent=0 // pred_region
    _
  $region17: #{inception_blk_forward.2} parent=0 // pred_fallthru
    _
  // Predicated region
  $region18: #{inception_blk_forward.2} parent=0 // pred_check
    _
  $region19: #{inception_blk_forward.2} parent=0 // pred_check_branch
    %23 = sbr.rel (0) target = $region21
  $region20: #{inception_blk_forward.2} parent=0 // pred_region
    _
  $region21: #{inception_blk_forward.2} parent=0 // pred_fallthru
    _
  // Predicated region
  $region22: #{inception_blk_forward.2} parent=0 // pred_check
    _
  $region23: #{inception_blk_forward.2} parent=0 // pred_check_branch
    %25 = sbr.rel (0) target = $region25
  $region24: #{inception_blk_forward.2} parent=0 // pred_region
    _
  $region25: #{inception_blk_forward.2} parent=0 // pred_fallthru
    _
  %v26 = vld [vmem:[%s1] sm:$0xff]
  %v27 = vld [vmem:[%s1 + $0x8] sm:$0xff]
  %s28 = scalar_lea.vmem %s1, 16
  %v29 = vld [vmem:[%s28] sm:$0xff]
  %v30 = vld [vmem:[%s28 + $0x8] sm:$0xff]
  %v31 = vmax.f32 %v26, %v29
  %v32 = vmax.f32 %v27, %v30
  %s33 = scalar_lea.vmem %s1, 32
  %v34 = vld [vmem:[%s33] sm:$0xff]
  %v35 = vld [vmem:[%s33 + $0x8] sm:$0xff]
  %v36 = vmax.f32 %v31, %v34
  %v37 = vmax.f32 %v32, %v35
  %v38 = vld [vmem:[%s0] sm:$0xff]
  %v39 = vld [vmem:[%s0 + $0x8] sm:$0xff]
  %v40 = vld [vmem:[%s3] sm:$0xff]
  %v41 = vld [vmem:[%s3 + $0x8] sm:$0xff]
  %v42 = vld [vmem:[%s3 + $0x10] sm:$0xff]
  %v43 = vld [vmem:[%s3 + $0x18] sm:$0xf]
  %v44 = vld [vmem:[%s4] sm:$0xf]
  %vm45 = vcmask 31744
  %v47 = vsel %vm45, %v36, 0
  %v50 = vsel %vm45, %v37, 0
  %vm52 = vcmask 1043456
  %v54 = vsel %vm52, %v44, 0
  %56 = vmatprep.subr.mxu0 0.0
  %57 = vmatpush1.msra.mxu0 %v54
  %58 = vmatprep.subr.mxu0 0.0
  %59 = vmatpush1.msra.mxu0 0.0
  %60 = vmatprep.subr.mxu0 0.0
  %61 = vmatpush1.msra.mxu0 0.0
  %62 = vmatprep.subr.mxu0 0.0
  %63 = vmatpush1.msra.mxu0 0.0
  %64 = vmatprep.subr.mxu0 0.0
  %65 = vmatpush1.msra.mxu0 0.0
  %66 = vmatprep.subr.mxu0 0.0
  %67 = vmatpush1.msra.mxu0 0.0
  %68 = vmatprep.subr.mxu0 0.0
  %69 = vmatpush1.msra.mxu0 0.0
  %70 = vmatprep.subr.mxu0 0.0
  %71 = vmatpush1.msra.mxu0 0.0
  %72 = vmatprep.subr.mxu0 0.0
  %73 = vmatpush1.msra.mxu0 0.0
  %74 = vmatprep.subr.mxu0 0.0
  %75 = vmatpush1.msra.mxu0 0.0
  %76 = vmatprep.subr.mxu0 0.0
  %77 = vmatpush1.msra.mxu0 0.0
  %78 = vmatprep.subr.mxu0 0.0
  %79 = vmatpush1.msra.mxu0 0.0
  %80 = vmatprep.subr.mxu0 0.0
  %81 = vmatpush1.msra.mxu0 0.0
  %82 = vmatprep.subr.mxu0 0.0
  %83 = vmatpush1.msra.mxu0 0.0
  %84 = vmatprep.subr.mxu0 0.0
  %85 = vmatpush1.msra.mxu0 0.0
  %86 = vmatprep.subr.mxu0 0.0
  %87 = vmatpush1.msra.mxu0 0.0
  %88 = vmatprep.subr.mxu0 0.0
  %89 = vmatpush1.msra.mxu0 0.0
  %90 = vmatprep.subr.mxu0 0.0
  %91 = vmatpush1.msra.mxu0 0.0
  %92 = vmatprep.subr.mxu0 0.0
  %93 = vmatpush1.msra.mxu0 0.0
  %94 = vmatprep.subr.mxu0 0.0
  %95 = vmatpush1.msra.mxu0 0.0
  %96 = vmatprep.subr.mxu0 0.0
  %97 = vmatpush1.msra.mxu0 0.0
  %98 = vmatprep.subr.mxu0 0.0
  %99 = vmatpush1.msra.mxu0 0.0
  %100 = vmatprep.subr.mxu0 0.0
  %101 = vmatpush1.msra.mxu0 0.0
  %102 = vmatprep.subr.mxu0 0.0
  %103 = vmatpush1.msra.mxu0 0.0
  %104 = vmatprep.subr.mxu0 0.0
  %105 = vmatpush1.msra.mxu0 0.0
  %106 = vmatprep.subr.mxu0 0.0
  %107 = vmatpush1.msra.mxu0 0.0
  %108 = vmatprep.subr.mxu0 0.0
  %109 = vmatpush1.msra.mxu0 0.0
  %110 = vmatprep.subr.mxu0 0.0
  %111 = vmatpush1.msra.mxu0 0.0
  %112 = vmatprep.subr.mxu0 0.0
  %113 = vmatpush1.msra.mxu0 0.0
  %114 = vmatprep.subr.mxu0 0.0
  %115 = vmatpush1.msra.mxu0 0.0
  %116 = vmatprep.subr.mxu0 0.0
  %117 = vmatpush1.msra.mxu0 0.0
  %118 = vmatprep.subr.mxu0 0.0
  %119 = vmatpush1.msra.mxu0 0.0
  %120 = vmatprep.mubr.f32.mxu0 0.0
  %121 = vmatmul.mubr.f32.gmra.mrb[0].mxu0 %v47
  %v122 = vpop.f32.mrb[0].mxu0
  %v123 = vadd.f32 0.0, %v122
  %v124 = vpop.f32.mrb[0].mxu0
  %125 = vmatprep.mubr.f32.mxu0 0.0
  %126 = vmatmul.mubr.f32.gmra.mrb[0].mxu0 %v50
  %v127 = vpop.f32.mrb[0].mxu0
  %v128 = vadd.f32 0.0, %v127
  %v129 = vpop.f32.mrb[0].mxu0
  %130 = vdwg.mxu0
  %vm131 = vcmask 228352
  %v133 = vsel %vm131, %v38, 0
  %v136 = vsel %vm131, %v39, 0
  %v139 = vsel %vm52, %v43, 0
  %141 = vmatprep.subr.mxu0 0.0
  %142 = vmatpush1.msra.mxu0 %v40
  %143 = vmatprep.subr.mxu0 0.0
  %144 = vmatpush1.msra.mxu0 %v41
  %145 = vmatprep.subr.mxu0 0.0
  %146 = vmatpush1.msra.mxu0 %v42
  %147 = vmatprep.subr.mxu0 0.0
  %148 = vmatpush1.msra.mxu0 %v139
  %149 = vmatprep.subr.mxu0 0.0
  %150 = vmatpush1.msra.mxu0 0.0
  %151 = vmatprep.subr.mxu0 0.0
  %152 = vmatpush1.msra.mxu0 0.0
  %153 = vmatprep.subr.mxu0 0.0
  %154 = vmatpush1.msra.mxu0 0.0
  %155 = vmatprep.subr.mxu0 0.0
  %156 = vmatpush1.msra.mxu0 0.0
  %157 = vmatprep.subr.mxu0 0.0
  %158 = vmatpush1.msra.mxu0 0.0
  %159 = vmatprep.subr.mxu0 0.0
  %160 = vmatpush1.msra.mxu0 0.0
  %161 = vmatprep.subr.mxu0 0.0
  %162 = vmatpush1.msra.mxu0 0.0
  %163 = vmatprep.subr.mxu0 0.0
  %164 = vmatpush1.msra.mxu0 0.0
  %165 = vmatprep.subr.mxu0 0.0
  %166 = vmatpush1.msra.mxu0 0.0
  %167 = vmatprep.subr.mxu0 0.0
  %168 = vmatpush1.msra.mxu0 0.0
  %169 = vmatprep.subr.mxu0 0.0
  %170 = vmatpush1.msra.mxu0 0.0
  %171 = vmatprep.subr.mxu0 0.0
  %172 = vmatpush1.msra.mxu0 0.0
  %173 = vmatprep.subr.mxu0 0.0
  %174 = vmatpush1.msra.mxu0 0.0
  %175 = vmatprep.subr.mxu0 0.0
  %176 = vmatpush1.msra.mxu0 0.0
  %177 = vmatprep.subr.mxu0 0.0
  %178 = vmatpush1.msra.mxu0 0.0
  %179 = vmatprep.subr.mxu0 0.0
  %180 = vmatpush1.msra.mxu0 0.0
  %181 = vmatprep.subr.mxu0 0.0
  %182 = vmatpush1.msra.mxu0 0.0
  %183 = vmatprep.subr.mxu0 0.0
  %184 = vmatpush1.msra.mxu0 0.0
  %185 = vmatprep.subr.mxu0 0.0
  %186 = vmatpush1.msra.mxu0 0.0
  %187 = vmatprep.subr.mxu0 0.0
  %188 = vmatpush1.msra.mxu0 0.0
  %189 = vmatprep.subr.mxu0 0.0
  %190 = vmatpush1.msra.mxu0 0.0
  %191 = vmatprep.subr.mxu0 0.0
  %192 = vmatpush1.msra.mxu0 0.0
  %193 = vmatprep.subr.mxu0 0.0
  %194 = vmatpush1.msra.mxu0 0.0
  %195 = vmatprep.subr.mxu0 0.0
  %196 = vmatpush1.msra.mxu0 0.0
  %197 = vmatprep.subr.mxu0 0.0
  %198 = vmatpush1.msra.mxu0 0.0
  %199 = vmatprep.subr.mxu0 0.0
  %200 = vmatpush1.msra.mxu0 0.0
  %201 = vmatprep.subr.mxu0 0.0
  %202 = vmatpush1.msra.mxu0 0.0
  %203 = vmatprep.subr.mxu0 0.0
  %204 = vmatpush1.msra.mxu0 0.0
  %205 = vmatprep.mubr.f32.mxu0 0.0
  %206 = vmatmul.mubr.f32.gmra.mrb[0].mxu0 %v133
  %v207 = vpop.f32.mrb[0].mxu0
  %v208 = vadd.f32 %v123, %v207
  %v209 = vpop.f32.mrb[0].mxu0
  %210 = vmatprep.mubr.f32.mxu0 0.0
  %211 = vmatmul.mubr.f32.gmra.mrb[0].mxu0 %v136
  %v212 = vpop.f32.mrb[0].mxu0
  %v213 = vadd.f32 %v128, %v212
  %v214 = vpop.f32.mrb[0].mxu0
  %215 = vdwg.mxu0
  %v216 = vld [vmem:[%s5] sm:$0x1]
  %v218 = vlaneseq
  %v219 = vshrl.u32 %v218, 7
  %v220 = vsub.s32 0, %v219
  %v221 = vrot.slane %v216, %v220
  %v223 = vadd.f32 %v208, %v221
  %v224 = vadd.f32 %v213, %v221
  %225 = vst [vmem:[%s6] sm:$0xff] %v223
  %226 = vst [vmem:[%s6 + $0x8] sm:$0xff] %v224
  %v227 = vld [vmem:[%s2] sm:$0xff]
  %v228 = vld [vmem:[%s2 + $0x8] sm:$0xff]
  %230 = vset.pattern.permute.xlu0 0
  %231 = vperm.xlu0 %230, %v227
  %v232 = vpop.permute.xlu0 %231
  %235 = vset.pattern.permute.xlu0 0
  %236 = vperm.xlu0 %235, %v228
  %v237 = vpop.permute.xlu0 %236
  %v239 = vmul.f32 %v223, %v232
  %v240 = vmul.f32 %v224, %v237
  %v241 = vadd.f32 %v239, %v240
  %v242 = vrot.slane %v241, 4
  %v243 = vadd.f32 %v241, %v242
  %v244 = vrot.slane %v243, 2
  %v245 = vadd.f32 %v243, %v244
  %v246 = vrot.slane %v245, 1
  %v247 = vadd.f32 %v245, %v246
  %248 = vst [vmem:[%s7] sm:$0x1] %v247
  %v249 = vmul.f32 %v239, %v223
  %v250 = vmul.f32 %v240, %v224
  %v251 = vadd.f32 %v249, %v250
  %v252 = vrot.slane %v251, 4
  %v253 = vadd.f32 %v251, %v252
  %v254 = vrot.slane %v253, 2
  %v255 = vadd.f32 %v253, %v254
  %v256 = vrot.slane %v255, 1
  %v257 = vadd.f32 %v255, %v256
  %258 = vst [vmem:[%s8] sm:$0x1] %v257
  // Predicated region
  $region26: #{inception_blk_forward.2} parent=0 // pred_check
    _
  $region27: #{inception_blk_forward.2} parent=0 // pred_check_branch
    %260 = sbr.rel (0) target = $region29
  $region28: #{inception_blk_forward.2} parent=0 // pred_region
    _
  $region29: #{inception_blk_forward.2} parent=0 // pred_fallthru
    _
  // Predicated region
  $region30: #{inception_blk_forward.2} parent=0 // pred_check
    _
  $region31: #{inception_blk_forward.2} parent=0 // pred_check_branch
    %262 = sbr.rel (0) target = $region33
  $region32: #{inception_blk_forward.2} parent=0 // pred_region
    _
  $region33: #{inception_blk_forward.2} parent=0 // pred_fallthru
    _
  // Predicated region
  $region34: #{inception_blk_forward.2} parent=0 // pred_check
    _
  $region35: #{inception_blk_forward.2} parent=0 // pred_check_branch
    %264 = sbr.rel (0) target = $region37
  $region36: #{inception_blk_forward.2} parent=0 // pred_region
    _
  $region37: #{inception_blk_forward.2} parent=0 // pred_fallthru
    _
  // Predicated region
  $region38: #{inception_blk_forward.2} parent=0 // pred_check
    _
  $region39: #{inception_blk_forward.2} parent=0 // pred_check_branch
    %266 = sbr.rel (0) target = $region41
  $region40: #{inception_blk_forward.2} parent=0 // pred_region
    _
  $region41: #{inception_blk_forward.2} parent=0 // pred_fallthru
    _
  // Predicated region
  $region42: #{inception_blk_forward.2} parent=0 // pred_check
    _
  $region43: #{inception_blk_forward.2} parent=0 // pred_check_branch
    %268 = sbr.rel (0) target = $region45
  $region44: #{inception_blk_forward.2} parent=0 // pred_region
    _
  $region45: #{inception_blk_forward.2} parent=0 // pred_fallthru
    _
  // Predicated region
  $region46: #{inception_blk_forward.2} parent=0 // pred_check
    _
  $region47: #{inception_blk_forward.2} parent=0 // pred_check_branch
    %270 = sbr.rel (0) target = $region49
  $region48: #{inception_blk_forward.2} parent=0 // pred_region
    _
  $region49: #{inception_blk_forward.2} parent=0 // pred_fallthru
    _

</llo_original>
